<compile_context>
chip_gen: v7x
topology: tpu7x:2x2x1
jax: 0.10.0
libtpu: 0.0.40
codegen_flags: <defaults>
</compile_context>

<pallas_src>
import jax
import jax.numpy as jnp
from jax import lax
from jax.experimental import pallas as pl
from jax.experimental.pallas import tpu as pltpu


def _round_up(x, m):
    return (x + m - 1) // m * m


def _vq_kernel(z_ref, w_ref, wsq_ref, o_ref):
    z = z_ref[...]                                   # (tb, E_pad), input dtype
    w = w_ref[...]                                   # (K_pad, E_pad), input dtype
    k_pad = w.shape[0]

    # cross = z @ w.T without materializing the transpose (MXU, f32 accumulate)
    cross = lax.dot_general(
        z, w,
        dimension_numbers=(((1,), (1,)), ((), ())),
        preferred_element_type=jnp.float32,
    )                                                # (tb, K_pad) f32

    # score = ||w||^2 - 2 z.w  (||z||^2 dropped: constant per row, same argmin)
    d2 = wsq_ref[...] - 2.0 * cross                  # (1,K) broadcasts to (tb,K)

    # first argmin along K (matches torch.argmin tie-breaking)
    iota = lax.broadcasted_iota(jnp.int32, d2.shape, 1)
    min_d = jnp.min(d2, axis=1, keepdims=True)
    first_idx = jnp.min(jnp.where(d2 <= min_d, iota, k_pad),
                        axis=1, keepdims=True)       # (tb, 1)

    # gather W[idx] via one-hot matmul on the MXU; 0/1 is exact in any dtype,
    # W stays at source precision so rows are reproduced exactly.
    onehot = (iota == first_idx).astype(w.dtype)     # (tb, K_pad)
    out = jnp.dot(onehot, w, preferred_element_type=jnp.float32)
    o_ref[...] = out.astype(o_ref.dtype)


def vector_quantize_sampler(zq, emb_weight, *, tb=None):
    """Pallas forward of VectorQuantizeSampler.

    zq:         (B, E) proposed embeddings
    emb_weight: (K, E) embedding table (nn.Embedding.weight)
    returns:    (B, E) nearest embedding rows (first index on ties)
    """
    B, E = zq.shape
    K, E2 = emb_weight.shape
    assert E == E2, "embedding dims must match"

    # --- tile / padding choices -------------------------------------------
    if tb is None:
        # 256 rows matches the 256-wide MXU on v6e/v7x and gives a multi-step
        # (pipelined, dual-TC-shardable) grid for real batch sizes.
        tb = 256 if B >= 256 else _round_up(B, 8)
    tb = _round_up(tb, 8)                    # sublane multiple
    B_pad = _round_up(B, tb)
    E_pad = _round_up(E, 128)                # lane-dense output / MXU N dim
    K_pad = _round_up(K, 128)                # lane-dense distance reductions

    zq_p = jnp.pad(zq, ((0, B_pad - B), (0, E_pad - E)))
    w_p = jnp.pad(emb_weight, ((0, K_pad - K), (0, E_pad - E)))

    # Hoisted ||w||^2 (f32).  Padded rows get +inf so they never win argmin.
    w_sq = jnp.sum(emb_weight.astype(jnp.float32) ** 2, axis=-1)
    w_sq = jnp.pad(w_sq, (0, K_pad - K), constant_values=jnp.inf)[None, :]

    # Rough VMEM check: double-buffered batch tiles + resident codebook.
    itemsize = jnp.dtype(zq.dtype).itemsize
    vmem_est = (2 * tb * E_pad * itemsize          # zq tile (double-buffered)
                + 2 * tb * E_pad * itemsize        # out tile
                + 2 * K_pad * E_pad * itemsize     # codebook
                + 2 * K_pad * 4                    # ||w||^2
                + tb * K_pad * 4)                  # in-kernel (tb, K) f32 temps
    vmem_limit = max(32 * 1024 * 1024, _round_up(vmem_est + (8 << 20), 1 << 20))

    out = pl.pallas_call(
        _vq_kernel,
        out_shape=jax.ShapeDtypeStruct((B_pad, E_pad), zq.dtype),
        grid_spec=pltpu.PrefetchScalarGridSpec(
            num_scalar_prefetch=0,
            grid=(B_pad // tb,),
            in_specs=[
                pl.BlockSpec((tb, E_pad), lambda i: (i, 0)),     # zq batch tile
                pl.BlockSpec((K_pad, E_pad), lambda i: (0, 0)),  # full codebook
                pl.BlockSpec((1, K_pad), lambda i: (0, 0)),      # hoisted ||w||^2
            ],
            out_specs=pl.BlockSpec((tb, E_pad), lambda i: (i, 0)),
        ),
        compiler_params=pltpu.CompilerParams(
            dimension_semantics=("parallel",),
            vmem_limit_bytes=int(vmem_limit),
        ),
    )(zq_p, w_p, w_sq)

    return out[:B, :E]


if __name__ == "__main__":
    key = jax.random.PRNGKey(0)
    k1, k2 = jax.random.split(key)

    B, E, K = 8, 32, 16  # batch, embedding dim, codebook size

    zq = jax.random.normal(k1, (B, E), dtype=jnp.float32)
    # Deterministic "nn.Embedding"-style init (N(0,1)), synthetic weights.
    emb_weight = jax.random.normal(k2, (K, E), dtype=jnp.float32)

    out = vector_quantize_sampler(zq, emb_weight)
    out = jax.block_until_ready(out)

    # in-script sanity check against pure-JAX reference
    d = jnp.sum((zq[:, None, :] - emb_weight[None, :, :]) ** 2, axis=-1)
    ref = emb_weight[jnp.argmin(d, axis=1)]
    assert out.shape == (B, E)
    assert jnp.allclose(out, ref, atol=1e-5), "mismatch vs reference"

    print("KERNEL_OK")
</pallas_src>

<mosaic_0001>
module attributes {stable_mosaic.version = 11 : i64} {
  func.func @_vq_kernel(%arg0: i32, %arg1: memref<8x128xf32, #tpu.memory_space<vmem>>, %arg2: memref<128x128xf32, #tpu.memory_space<vmem>>, %arg3: memref<1x128xf32, #tpu.memory_space<vmem>>, %arg4: memref<8x128xf32, #tpu.memory_space<vmem>>) attributes {dimension_semantics = [#tpu.dimension_semantics<parallel>], iteration_bounds = array<i64: 1>, scalar_prefetch = 0 : i64, scratch_operands = 0 : i64, tpu.core_type = #tpu.core_type<tc>, window_params = [{transform_indices = @transform_0, window_bounds = array<i64: 8, 128>}, {pipeline_mode = #tpu.pipeline_mode<synchronous>, transform_indices = @transform_1, window_bounds = array<i64: 128, 128>}, {pipeline_mode = #tpu.pipeline_mode<synchronous>, transform_indices = @transform_2, window_bounds = array<i64: 1, 128>}, {transform_indices = @transform_3, window_bounds = array<i64: 8, 128>}]} {
    %c0 = arith.constant 0 : index
    %c0_0 = arith.constant 0 : index
    %0 = vector.load %arg1[%c0, %c0_0] : memref<8x128xf32, #tpu.memory_space<vmem>>, vector<8x128xf32>
    %c0_1 = arith.constant 0 : index
    %c0_2 = arith.constant 0 : index
    %1 = vector.load %arg2[%c0_1, %c0_2] : memref<128x128xf32, #tpu.memory_space<vmem>>, vector<128x128xf32>
    %cst = arith.constant dense<0.000000e+00> : vector<8x128xf32>
    %2 = tpu.matmul %0, %1, %cst {dimension_numbers = #tpu.dot_dimension_numbers<[1], [1], [0], [0], [0, 0, 1, 0], [], []>} : vector<8x128xf32>, vector<128x128xf32>, vector<8x128xf32> -> vector<8x128xf32>
    %c0_3 = arith.constant 0 : index
    %c0_4 = arith.constant 0 : index
    %3 = vector.load %arg3[%c0_3, %c0_4] : memref<1x128xf32, #tpu.memory_space<vmem>>, vector<1x128xf32>
    %cst_5 = arith.constant 2.000000e+00 : f32
    %4 = vector.broadcast %cst_5 : f32 to vector<8x128xf32>
    %5 = arith.mulf %4, %2 : vector<8x128xf32>
    %6 = vector.broadcast %3 : vector<1x128xf32> to vector<8x128xf32>
    %7 = arith.subf %6, %5 : vector<8x128xf32>
    %8 = tpu.iota {dimensions = array<i32: 1>} : vector<8x128xi32>
    %cst_6 = arith.constant dense<0x7F800000> : vector<8xf32>
    %9 = vector.multi_reduction <minimumf>, %7, %cst_6 [1] : vector<8x128xf32> to vector<8xf32>
    %10 = vector.shape_cast %9 : vector<8xf32> to vector<8x1xf32>
    %11 = vector.broadcast %10 : vector<8x1xf32> to vector<8x128xf32>
    %12 = arith.cmpf ole, %7, %11 : vector<8x128xf32>
    %c128_i32 = arith.constant 128 : i32
    %13 = vector.broadcast %c128_i32 : i32 to vector<8x128xi32>
    %14 = arith.select %12, %8, %13 : vector<8x128xi1>, vector<8x128xi32>
    %cst_7 = arith.constant dense<2147483647> : vector<8xi32>
    %15 = vector.multi_reduction <minsi>, %14, %cst_7 [1] : vector<8x128xi32> to vector<8xi32>
    %16 = vector.shape_cast %15 : vector<8xi32> to vector<8x1xi32>
    %17 = vector.broadcast %16 : vector<8x1xi32> to vector<8x128xi32>
    %18 = arith.cmpi eq, %8, %17 : vector<8x128xi32>
    %19 = arith.extui %18 : vector<8x128xi1> to vector<8x128xi32>
    %20 = arith.sitofp %19 : vector<8x128xi32> to vector<8x128xf32>
    %cst_8 = arith.constant dense<0.000000e+00> : vector<8x128xf32>
    %21 = tpu.matmul %20, %1, %cst_8 {dimension_numbers = #tpu.dot_dimension_numbers<[1], [0], [0], [1], [0, 0, 1, 1], [], []>} : vector<8x128xf32>, vector<128x128xf32>, vector<8x128xf32> -> vector<8x128xf32>
    %c0_9 = arith.constant 0 : index
    %c0_10 = arith.constant 0 : index
    %22 = vector.load %arg4[%c0_9, %c0_10] : memref<8x128xf32, #tpu.memory_space<vmem>>, vector<8x128xf32>
    tpu.vector_store %arg4[%c0_9, %c0_10], %21 {strides = array<i32>} : memref<8x128xf32, #tpu.memory_space<vmem>>, vector<8x128xf32>,
    return
  }
  func.func @transform_0(%arg0: i32) -> (i32, i32) {
    %c0_i32 = arith.constant 0 : i32
    %c0_i32_0 = arith.constant 0 : i32
    return %arg0, %c0_i32 : i32, i32
  }
  func.func @transform_1(%arg0: i32) -> (i32, i32) {
    %c0_i32 = arith.constant 0 : i32
    %c0_i32_0 = arith.constant 0 : i32
    %c0_i32_1 = arith.constant 0 : i32
    return %c0_i32, %c0_i32_0 : i32, i32
  }
  func.func @transform_2(%arg0: i32) -> (i32, i32) {
    %c0_i32 = arith.constant 0 : i32
    %c0_i32_0 = arith.constant 0 : i32
    %c0_i32_1 = arith.constant 0 : i32
    return %c0_i32, %c0_i32_0 : i32, i32
  }
  func.func @transform_3(%arg0: i32) -> (i32, i32) {
    %c0_i32 = arith.constant 0 : i32
    %c0_i32_0 = arith.constant 0 : i32
    return %arg0, %c0_i32 : i32, i32
  }
}

</mosaic_0001>

<llo_original>
// kernel: tpu_custom_call.1
$region0: #{tpu_custom_call.1}
  #allocation0 [shape = 'u32[]', space=smem, size = 0x4, offset = 0x4, fixed_abs, tag = 'smem constant byte address 0x4 - core index']
  #allocation1 [shape = 'u32[144,128]{1,0:T(1,128)}', space=vmem, size = 0x12000, scoped, tag = 'internal scratch']
  %s0 = inlined_call_operand.hbm [shape: f32[8,128], index: 0, kind: input, shape index: {}]
  %s1 = inlined_call_operand.hbm [shape: f32[128,128], index: 1, kind: input, shape index: {}]
  %s2 = inlined_call_operand.vmem [shape: f32[1,128], index: 2, kind: input, shape index: {}]
  %s3 = inlined_call_operand.hbm [shape: f32[8,128], index: 3, kind: output, shape index: {}]
  %s4 = sld [smem:[#allocation0]]
  $region30: #{tpu_custom_call.1} parent=0
    _
  %s6 = ssub.s32 1, %s4
  %s7 = scalar_select 0, %s6, %s4
  $region1: #{tpu_custom_call.1} parent=0
    #allocation2 [shape = 'u8[4096]{0}', space=vmem, size = 0x1000, scoped, tag = 'input window, operand 0, single buffered']
    #allocation3 [shape = 's32[1]{0}', space=sflag, size = 0x4, scoped, tag = 'scoped memory for tpu_custom_call.1']
    #allocation4 [shape = 's32[1]{0}', space=sflag, size = 0x4, scoped, tag = 'scoped memory for tpu_custom_call.1']
    #allocation5 [shape = 'u8[65536]{0}', space=vmem, size = 0x10000, scoped, tag = 'input window, operand 1, single buffered']
    #allocation6 [shape = 's32[1]{0}', space=sflag, size = 0x4, scoped, tag = 'scoped memory for tpu_custom_call.1']
    #allocation7 [shape = 'u8[4096]{0}', space=vmem, size = 0x1000, scoped, tag = 'output window, operand 0, single buffered']
    %8 = vsyncpa [#allocation3], 0
    %9 = vsyncpa [#allocation6], 0
    %10 = vsyncpa [#allocation4], 0
    // Predicated region
    $region2: #{tpu_custom_call.1} parent=1 // pred_check
      _
    $region3: #{tpu_custom_call.1} parent=1 // pred_check_branch
      %12 = sbr.rel (0) target = $region5
    $region4: #{tpu_custom_call.1} parent=1 // pred_region
      %s14 = ssub.s32 128, 128
      %15 = vsyncadd [#allocation3], %s14
      %s17 = sshll.u32 [#allocation2], 4
      %s18 = int_to_ptr.vmem [resolvable:$true] %s17
      %20 = dma.hbm_to_vmem [thread:$0]  %s0, 128, %s18, [#allocation3]
    $region5: #{tpu_custom_call.1} parent=1 // pred_fallthru
      _
    // Predicated region
    $region6: #{tpu_custom_call.1} parent=1 // pred_check
      _
    $region7: #{tpu_custom_call.1} parent=1 // pred_check_branch
      %22 = sbr.rel (0) target = $region9
    $region8: #{tpu_custom_call.1} parent=1 // pred_region
      %s24 = ssub.s32 2048, 2048
      %25 = vsyncadd [#allocation6], %s24
      %s26 = sshll.u32 [#allocation5], 4
      %s27 = int_to_ptr.vmem [resolvable:$true] %s26
      %32 = dma.hbm_to_vmem [thread:$0]  %s1, 2048, %s27, [#allocation6], 128, 128, 8
    $region9: #{tpu_custom_call.1} parent=1 // pred_fallthru
      _
    // Predicated region
    $region10: #{tpu_custom_call.1} parent=1 // pred_check
      _
    $region11: #{tpu_custom_call.1} parent=1 // pred_check_branch
      %34 = sbr.rel (0) target = $region13
    $region12: #{tpu_custom_call.1} parent=1 // pred_region
      _
    $region13: #{tpu_custom_call.1} parent=1 // pred_fallthru
      _
    // Predicated region
    $region14: #{tpu_custom_call.1} parent=1 // pred_check
      _
    $region15: #{tpu_custom_call.1} parent=1 // pred_check_branch
      %36 = sbr.rel (0) target = $region17
    $region16: #{tpu_custom_call.1} parent=1 // pred_region
      %37 = dma.done [#allocation3], 128
    $region17: #{tpu_custom_call.1} parent=1 // pred_fallthru
      _
    // Predicated region
    $region18: #{tpu_custom_call.1} parent=1 // pred_check
      _
    $region19: #{tpu_custom_call.1} parent=1 // pred_check_branch
      %39 = sbr.rel (0) target = $region21
    $region20: #{tpu_custom_call.1} parent=1 // pred_region
      %40 = dma.done [#allocation6], 2048
    $region21: #{tpu_custom_call.1} parent=1 // pred_fallthru
      _
    %v41 = vld [vmem:[#allocation2] sm:$0xff]
    %v42 = vld [vmem:[#allocation5] sm:$0xff]
    %v43 = vld [vmem:[#allocation5 + $0x8] sm:$0xff]
    %v44 = vld [vmem:[#allocation5 + $0x10] sm:$0xff]
    %v45 = vld [vmem:[#allocation5 + $0x18] sm:$0xff]
    %v46 = vld [vmem:[#allocation5 + $0x20] sm:$0xff]
    %v47 = vld [vmem:[#allocation5 + $0x28] sm:$0xff]
    %v48 = vld [vmem:[#allocation5 + $0x30] sm:$0xff]
    %v49 = vld [vmem:[#allocation5 + $0x38] sm:$0xff]
    %v50 = vld [vmem:[#allocation5 + $0x40] sm:$0xff]
    %v51 = vld [vmem:[#allocation5 + $0x48] sm:$0xff]
    %v52 = vld [vmem:[#allocation5 + $0x50] sm:$0xff]
    %v53 = vld [vmem:[#allocation5 + $0x58] sm:$0xff]
    %v54 = vld [vmem:[#allocation5 + $0x60] sm:$0xff]
    %v55 = vld [vmem:[#allocation5 + $0x68] sm:$0xff]
    %v56 = vld [vmem:[#allocation5 + $0x70] sm:$0xff]
    %v57 = vld [vmem:[#allocation5 + $0x78] sm:$0xff]
    %58 = vmatprep.subr.mxu0 0.0
    %59 = vmatpush1.xpose.msra.mxu0 %v42
    %60 = vmatprep.subr.mxu0 0.0
    %61 = vmatpush1.xpose.msra.mxu0 %v43
    %62 = vmatprep.subr.mxu0 0.0
    %63 = vmatpush1.xpose.msra.mxu0 %v44
    %64 = vmatprep.subr.mxu0 0.0
    %65 = vmatpush1.xpose.msra.mxu0 %v45
    %66 = vmatprep.subr.mxu0 0.0
    %67 = vmatpush1.xpose.msra.mxu0 %v46
    %68 = vmatprep.subr.mxu0 0.0
    %69 = vmatpush1.xpose.msra.mxu0 %v47
    %70 = vmatprep.subr.mxu0 0.0
    %71 = vmatpush1.xpose.msra.mxu0 %v48
    %72 = vmatprep.subr.mxu0 0.0
    %73 = vmatpush1.xpose.msra.mxu0 %v49
    %74 = vmatprep.subr.mxu0 0.0
    %75 = vmatpush1.xpose.msra.mxu0 %v50
    %76 = vmatprep.subr.mxu0 0.0
    %77 = vmatpush1.xpose.msra.mxu0 %v51
    %78 = vmatprep.subr.mxu0 0.0
    %79 = vmatpush1.xpose.msra.mxu0 %v52
    %80 = vmatprep.subr.mxu0 0.0
    %81 = vmatpush1.xpose.msra.mxu0 %v53
    %82 = vmatprep.subr.mxu0 0.0
    %83 = vmatpush1.xpose.msra.mxu0 %v54
    %84 = vmatprep.subr.mxu0 0.0
    %85 = vmatpush1.xpose.msra.mxu0 %v55
    %86 = vmatprep.subr.mxu0 0.0
    %87 = vmatpush1.xpose.msra.mxu0 %v56
    %88 = vmatprep.subr.mxu0 0.0
    %89 = vmatpush1.xpose.msra.mxu0 %v57
    %90 = vmatprep.subr.mxu0 0.0
    %91 = vmatpush1.xpose.msra.mxu0 0.0
    %92 = vmatprep.subr.mxu0 0.0
    %93 = vmatpush1.xpose.msra.mxu0 0.0
    %94 = vmatprep.subr.mxu0 0.0
    %95 = vmatpush1.xpose.msra.mxu0 0.0
    %96 = vmatprep.subr.mxu0 0.0
    %97 = vmatpush1.xpose.msra.mxu0 0.0
    %98 = vmatprep.subr.mxu0 0.0
    %99 = vmatpush1.xpose.msra.mxu0 0.0
    %100 = vmatprep.subr.mxu0 0.0
    %101 = vmatpush1.xpose.msra.mxu0 0.0
    %102 = vmatprep.subr.mxu0 0.0
    %103 = vmatpush1.xpose.msra.mxu0 0.0
    %104 = vmatprep.subr.mxu0 0.0
    %105 = vmatpush1.xpose.msra.mxu0 0.0
    %106 = vmatprep.subr.mxu0 0.0
    %107 = vmatpush1.xpose.msra.mxu0 0.0
    %108 = vmatprep.subr.mxu0 0.0
    %109 = vmatpush1.xpose.msra.mxu0 0.0
    %110 = vmatprep.subr.mxu0 0.0
    %111 = vmatpush1.xpose.msra.mxu0 0.0
    %112 = vmatprep.subr.mxu0 0.0
    %113 = vmatpush1.xpose.msra.mxu0 0.0
    %114 = vmatprep.subr.mxu0 0.0
    %115 = vmatpush1.xpose.msra.mxu0 0.0
    %116 = vmatprep.subr.mxu0 0.0
    %117 = vmatpush1.xpose.msra.mxu0 0.0
    %118 = vmatprep.subr.mxu0 0.0
    %119 = vmatpush1.xpose.msra.mxu0 0.0
    %120 = vmatprep.subr.mxu0 0.0
    %121 = vmatpush1.xpose.msra.mxu0 0.0
    %122 = vmatprep.mubr.f32.mxu0 0.0
    %123 = vmatmul.mubr.f32.gmra.mrb[0].mxu0 %v41
    %v124 = vpop.f32.mrb[0].mxu0
    %v125 = vadd.f32 0.0, %v124
    %v126 = vpop.f32.mrb[0].mxu0
    %127 = vdwg.mxu0
    %v128 = vld [vmem:[%s2] sm:$0x1]
    %v129 = vmul.f32 %v125, 2.0
    %v131 = vlaneseq
    %v132 = vshrl.u32 %v131, 7
    %v133 = vsub.s32 0, %v132
    %v134 = vrot.slane %v128, %v133
    %v136 = vsub.f32 %v134, %v129
    %v137 = vlaneseq
    %v138 = vand.u32 %v137, 127
    %139 = vmin.xlane.f32.xlu0 %v136
    %v140 = vpop.xlane.xlu0 %139
    %vm141 = vcmp.le.f32.partialorder %v136, %v140
    %v142 = vsel %vm141, %v138, 128
    %v143 = vand.u32 %v142, 65535
    %v144 = vshra.s32 %v142, 16
    %v145 = vcvt.s32.f32 %v143
    %v146 = vcvt.s32.f32 %v144
    %147 = vmin.xlane.f32.xlu0 %v146
    %v148 = vpop.xlane.xlu0 %147
    %vm149 = vcmp.eq.f32.partialorder %v146, %v148
    %v150 = vsel %vm149, %v145, inf
    %151 = vmin.xlane.f32.xlu0 %v150
    %v152 = vpop.xlane.xlu0 %151
    %v153 = vcvt.f32.s32 %v152
    %v154 = vcvt.f32.s32 %v148
    %v155 = vshll.u32 %v154, 16
    %v156 = vadd.s32 %v155, %v153
    %vm157 = vcmp.eq.s32.totalorder %v138, %v156
    %v158 = vsel %vm157, 1, 0
    %v159 = vcvt.s32.f32 %v158
    %160 = vmatprep.subr.mxu0 0.0
    %161 = vmatpush1.msra.mxu0 %v42
    %162 = vmatprep.subr.mxu0 0.0
    %163 = vmatpush1.msra.mxu0 %v43
    %164 = vmatprep.subr.mxu0 0.0
    %165 = vmatpush1.msra.mxu0 %v44
    %166 = vmatprep.subr.mxu0 0.0
    %167 = vmatpush1.msra.mxu0 %v45
    %168 = vmatprep.subr.mxu0 0.0
    %169 = vmatpush1.msra.mxu0 %v46
    %170 = vmatprep.subr.mxu0 0.0
    %171 = vmatpush1.msra.mxu0 %v47
    %172 = vmatprep.subr.mxu0 0.0
    %173 = vmatpush1.msra.mxu0 %v48
    %174 = vmatprep.subr.mxu0 0.0
    %175 = vmatpush1.msra.mxu0 %v49
    %176 = vmatprep.subr.mxu0 0.0
    %177 = vmatpush1.msra.mxu0 %v50
    %178 = vmatprep.subr.mxu0 0.0
    %179 = vmatpush1.msra.mxu0 %v51
    %180 = vmatprep.subr.mxu0 0.0
    %181 = vmatpush1.msra.mxu0 %v52
    %182 = vmatprep.subr.mxu0 0.0
    %183 = vmatpush1.msra.mxu0 %v53
    %184 = vmatprep.subr.mxu0 0.0
    %185 = vmatpush1.msra.mxu0 %v54
    %186 = vmatprep.subr.mxu0 0.0
    %187 = vmatpush1.msra.mxu0 %v55
    %188 = vmatprep.subr.mxu0 0.0
    %189 = vmatpush1.msra.mxu0 %v56
    %190 = vmatprep.subr.mxu0 0.0
    %191 = vmatpush1.msra.mxu0 %v57
    %192 = vmatprep.subr.mxu0 0.0
    %193 = vmatpush1.msra.mxu0 0.0
    %194 = vmatprep.subr.mxu0 0.0
    %195 = vmatpush1.msra.mxu0 0.0
    %196 = vmatprep.subr.mxu0 0.0
    %197 = vmatpush1.msra.mxu0 0.0
    %198 = vmatprep.subr.mxu0 0.0
    %199 = vmatpush1.msra.mxu0 0.0
    %200 = vmatprep.subr.mxu0 0.0
    %201 = vmatpush1.msra.mxu0 0.0
    %202 = vmatprep.subr.mxu0 0.0
    %203 = vmatpush1.msra.mxu0 0.0
    %204 = vmatprep.subr.mxu0 0.0
    %205 = vmatpush1.msra.mxu0 0.0
    %206 = vmatprep.subr.mxu0 0.0
    %207 = vmatpush1.msra.mxu0 0.0
    %208 = vmatprep.subr.mxu0 0.0
    %209 = vmatpush1.msra.mxu0 0.0
    %210 = vmatprep.subr.mxu0 0.0
    %211 = vmatpush1.msra.mxu0 0.0
    %212 = vmatprep.subr.mxu0 0.0
    %213 = vmatpush1.msra.mxu0 0.0
    %214 = vmatprep.subr.mxu0 0.0
    %215 = vmatpush1.msra.mxu0 0.0
    %216 = vmatprep.subr.mxu0 0.0
    %217 = vmatpush1.msra.mxu0 0.0
    %218 = vmatprep.subr.mxu0 0.0
    %219 = vmatpush1.msra.mxu0 0.0
    %220 = vmatprep.subr.mxu0 0.0
    %221 = vmatpush1.msra.mxu0 0.0
    %222 = vmatprep.subr.mxu0 0.0
    %223 = vmatpush1.msra.mxu0 0.0
    %224 = vmatprep.mubr.f32.mxu0 0.0
    %225 = vmatmul.mubr.f32.gmra.mrb[0].mxu0 %v159
    %v226 = vpop.f32.mrb[0].mxu0
    %v227 = vadd.f32 0.0, %v226
    %v228 = vpop.f32.mrb[0].mxu0
    %229 = vdwg.mxu0
    %230 = vst [vmem:[#allocation7] sm:$0xff] %v227
    // Predicated region
    $region22: #{tpu_custom_call.1} parent=1 // pred_check
      _
    $region23: #{tpu_custom_call.1} parent=1 // pred_check_branch
      %232 = sbr.rel (0) target = $region25
    $region24: #{tpu_custom_call.1} parent=1 // pred_region
      %s234 = ssub.s32 128, 128
      %235 = vsyncadd [#allocation4], %s234
      %s237 = sshll.u32 [#allocation7], 4
      %s238 = int_to_ptr.vmem [resolvable:$true] %s237
      %240 = dma.vmem_to_hbm [thread:$0]  %s238, 128, %s3, [#allocation4]
    $region25: #{tpu_custom_call.1} parent=1 // pred_fallthru
      _
    // Predicated region
    $region26: #{tpu_custom_call.1} parent=1 // pred_check
      _
    $region27: #{tpu_custom_call.1} parent=1 // pred_check_branch
      %242 = sbr.rel (0) target = $region29
    $region28: #{tpu_custom_call.1} parent=1 // pred_region
      %243 = dma.done [#allocation4], 128
    $region29: #{tpu_custom_call.1} parent=1 // pred_fallthru
      _
    %244 = vsyncpa [#allocation3], 1
    %245 = vsyncpa [#allocation6], 1
    %246 = vsyncpa [#allocation4], 1

</llo_original>
